<compile_context>
chip_gen: v7x
topology: tpu7x:2x2x1
jax: 0.10.0
libtpu: 0.0.40
codegen_flags: <defaults>
</compile_context>

<pallas_src>
import functools

import jax
import jax.numpy as jnp
from jax.experimental import pallas as pl
from jax.experimental.pallas import tpu as pltpu

_LANE = 128
_TILE_BYTES = 2 * 1024 * 1024      # per input buffer (x2 for double buffering)
_ROW_TILE = 128                    # multiple of 8 / 16 / 32 sublane packing
_PALLAS_MIN_BYTES = 1 << 20        # below this, a fused XLA reduce wins


def _gap_kernel(x_ref, o_ref, acc_ref, *, inv_spatial, spatial, ts, mask_cols):
    s = pl.program_id(1)

    @pl.when(s == 0)
    def _init():
        acc_ref[...] = jnp.zeros_like(acc_ref)

    tr = x_ref.shape[0]
    n_full = ts // _LANE
    rem = ts - n_full * _LANE
    col0 = s * ts  # first true column covered by this spatial tile

    if mask_cols:
        lane_ids = jax.lax.broadcasted_iota(jnp.int32, (1, _LANE), 1)

    # Lane-parallel partial sums on the VPU (f32 upcast fused per 128-lane
    # slice; slices are vreg-aligned so no relayout happens).  The cross-lane
    # (XLU) reduce is deferred to the finalize step.
    if n_full:
        partial = jnp.zeros((tr, _LANE), jnp.float32)
        for k in range(n_full):
            blk = x_ref[:, k * _LANE:(k + 1) * _LANE].astype(jnp.float32)
            if mask_cols:
                valid = (col0 + k * _LANE + lane_ids) < spatial
                blk = jnp.where(valid, blk, 0.0)
            partial = partial + blk
        acc_ref[...] += partial

    if rem:  # spatial tile narrower than a full lane group (only if ts == spatial)
        rblk = x_ref[:, n_full * _LANE:].astype(jnp.float32)
        if mask_cols:
            rem_ids = jax.lax.broadcasted_iota(jnp.int32, (1, rem), 1)
            rvalid = (col0 + n_full * _LANE + rem_ids) < spatial
            rblk = jnp.where(rvalid, rblk, 0.0)
        acc_ref[:, 0:1] += jnp.sum(rblk, axis=-1, keepdims=True)

    @pl.when(s == pl.num_programs(1) - 1)
    def _finalize():
        total = jnp.sum(acc_ref[...], axis=-1, keepdims=True)   # one XLU reduce / row tile
        o_ref[...] = (total * inv_spatial).astype(o_ref.dtype)


def gap_layer(x, *, force_pallas=False):
    """Global average pool: (B, C, H, W) -> (B, C, 1, 1)."""
    b, c, h, w = x.shape
    rows, spatial = b * c, h * w

    # Tiny activations: fused XLA reduce beats kernel launch + grid overhead.
    if not force_pallas and x.size * jnp.dtype(x.dtype).itemsize < _PALLAS_MIN_BYTES:
        return jnp.mean(x, axis=(2, 3), keepdims=True).astype(x.dtype)

    x2d = x.reshape(rows, spatial)
    itemsize = jnp.dtype(x.dtype).itemsize

    # Row tile: multiple of the sublane packing, or the full dim when small.
    tr = _ROW_TILE if rows > _ROW_TILE else rows
    # Spatial tile: multiple of 128, sized to ~_TILE_BYTES per buffer, or the
    # full dim when it already fits.
    ts_target = max(_LANE, (_TILE_BYTES // (tr * itemsize)) // _LANE * _LANE)
    ts = ts_target if spatial > ts_target else spatial
    mask_cols = (spatial % ts) != 0  # only the overhanging last tile needs it

    grid = (pl.cdiv(rows, tr), pl.cdiv(spatial, ts))

    kernel = functools.partial(
        _gap_kernel,
        inv_spatial=1.0 / spatial,
        spatial=spatial,
        ts=ts,
        mask_cols=mask_cols,
    )

    out2d = pl.pallas_call(
        kernel,
        out_shape=jax.ShapeDtypeStruct((rows, 1), x.dtype),
        grid_spec=pltpu.PrefetchScalarGridSpec(
            num_scalar_prefetch=0,
            grid=grid,
            in_specs=[pl.BlockSpec((tr, ts), lambda r, s: (r, s))],
            out_specs=pl.BlockSpec((tr, 1), lambda r, s: (r, 0)),
            scratch_shapes=[pltpu.VMEM((tr, _LANE), jnp.float32)],
        ),
        compiler_params=pltpu.CompilerParams(
            dimension_semantics=("parallel", "arbitrary"),
        ),
    )(x2d)

    return out2d.reshape(b, c, 1, 1)


if __name__ == "__main__":
    key = jax.random.PRNGKey(0)
    k1, k2, k3 = jax.random.split(key, 3)

    # 1) Small shape from the module spec — force the Pallas path.
    x_small = jax.random.normal(k1, (2, 4, 16, 16), dtype=jnp.float32)
    out_small = jax.block_until_ready(gap_layer(x_small, force_pallas=True))
    ref_small = jnp.mean(x_small, axis=(2, 3), keepdims=True)
    assert out_small.shape == (2, 4, 1, 1), out_small.shape
    assert jnp.allclose(out_small, ref_small, atol=1e-5, rtol=1e-5)

    # 2) Larger odd-sized input: multi-tile grid, accumulation across spatial
    #    grid steps, in-kernel remainder masking, row-tile overhang.
    x_big = jax.random.normal(k2, (3, 50, 72, 72), dtype=jnp.float32)
    out_big = jax.block_until_ready(gap_layer(x_big))
    ref_big = jnp.mean(x_big, axis=(2, 3), keepdims=True)
    assert out_big.shape == (3, 50, 1, 1), out_big.shape
    assert jnp.allclose(out_big, ref_big, atol=1e-4, rtol=1e-4)

    # 3) bf16 input (f32 accumulation inside the kernel).
    x_bf16 = jax.random.normal(k3, (2, 4, 16, 16), dtype=jnp.bfloat16)
    out_bf16 = jax.block_until_ready(gap_layer(x_bf16, force_pallas=True))
    ref_bf16 = jnp.mean(x_bf16.astype(jnp.float32), axis=(2, 3), keepdims=True)
    assert out_bf16.shape == (2, 4, 1, 1), out_bf16.shape
    assert jnp.allclose(out_bf16.astype(jnp.float32), ref_bf16, atol=1e-2, rtol=1e-2)

    print("KERNEL_OK")
</pallas_src>

<mosaic_0001>
module attributes {stable_mosaic.version = 11 : i64} {
  func.func @_gap_kernel(%arg0: i32, %arg1: i32, %arg2: memref<8x256xf32, #tpu.memory_space<vmem>>, %arg3: memref<8x1xf32, #tpu.memory_space<vmem>>, %arg4: memref<8x128xf32, #tpu.memory_space<vmem>>) attributes {dimension_semantics = [#tpu.dimension_semantics<parallel>, #tpu.dimension_semantics<arbitrary>], iteration_bounds = array<i64: 1, 1>, scalar_prefetch = 0 : i64, scratch_operands = 1 : i64, tpu.core_type = #tpu.core_type<tc>, window_params = [{transform_indices = @transform_0, window_bounds = array<i64: 8, 256>}, {transform_indices = @transform_1, window_bounds = array<i64: 8, 1>}]} {
    %c0_i32 = arith.constant 0 : i32
    %0 = arith.cmpi eq, %arg1, %c0_i32 : i32
    %1 = arith.extui %0 : i1 to i32
    %c0_i32_0 = arith.constant 0 : i32
    %2 = arith.cmpi ne, %1, %c0_i32_0 : i32
    scf.if %2 {
      %cst_9 = arith.constant 0.000000e+00 : f32
      %14 = vector.broadcast %cst_9 : f32 to vector<8x128xf32>
      %c0_10 = arith.constant 0 : index
      %c0_11 = arith.constant 0 : index
      %15 = vector.load %arg4[%c0_10, %c0_11] : memref<8x128xf32, #tpu.memory_space<vmem>>, vector<8x128xf32>
      tpu.vector_store %arg4[%c0_10, %c0_11], %14 {strides = array<i32>} : memref<8x128xf32, #tpu.memory_space<vmem>>, vector<8x128xf32>,
    } else {
    }
    %cst = arith.constant 0.000000e+00 : f32
    %3 = vector.broadcast %cst : f32 to vector<8x128xf32>
    %c0 = arith.constant 0 : index
    %c0_1 = arith.constant 0 : index
    %4 = vector.load %arg2[%c0, %c0_1] : memref<8x256xf32, #tpu.memory_space<vmem>>, vector<8x128xf32>
    %5 = arith.addf %3, %4 : vector<8x128xf32>
    %c0_2 = arith.constant 0 : index
    %c128 = arith.constant 128 : index
    %6 = vector.load %arg2[%c0_2, %c128] : memref<8x256xf32, #tpu.memory_space<vmem>>, vector<8x128xf32>
    %7 = arith.addf %5, %6 : vector<8x128xf32>
    %c0_3 = arith.constant 0 : index
    %c0_4 = arith.constant 0 : index
    %8 = vector.load %arg4[%c0_3, %c0_4] : memref<8x128xf32, #tpu.memory_space<vmem>>, vector<8x128xf32>
    %9 = arith.addf %8, %7 : vector<8x128xf32>
    %c0_5 = arith.constant 0 : index
    %c0_6 = arith.constant 0 : index
    %10 = vector.load %arg4[%c0_5, %c0_6] : memref<8x128xf32, #tpu.memory_space<vmem>>, vector<8x128xf32>
    tpu.vector_store %arg4[%c0_5, %c0_6], %9 {strides = array<i32>} : memref<8x128xf32, #tpu.memory_space<vmem>>, vector<8x128xf32>,
    %c0_i32_7 = arith.constant 0 : i32
    %11 = arith.cmpi eq, %arg1, %c0_i32_7 : i32
    %12 = arith.extui %11 : i1 to i32
    %c0_i32_8 = arith.constant 0 : i32
    %13 = arith.cmpi ne, %12, %c0_i32_8 : i32
    scf.if %13 {
      %c0_9 = arith.constant 0 : index
      %c0_10 = arith.constant 0 : index
      %14 = vector.load %arg4[%c0_9, %c0_10] : memref<8x128xf32, #tpu.memory_space<vmem>>, vector<8x128xf32>
      %cst_11 = arith.constant dense<0.000000e+00> : vector<8xf32>
      %15 = vector.multi_reduction <add>, %14, %cst_11 [1] : vector<8x128xf32> to vector<8xf32>
      %16 = vector.shape_cast %15 : vector<8xf32> to vector<8x1xf32>
      %cst_12 = arith.constant 3.906250e-03 : f32
      %17 = vector.broadcast %cst_12 : f32 to vector<8x1xf32>
      %18 = arith.mulf %16, %17 : vector<8x1xf32>
      %c0_13 = arith.constant 0 : index
      %c0_14 = arith.constant 0 : index
      %19 = vector.load %arg3[%c0_13, %c0_14] : memref<8x1xf32, #tpu.memory_space<vmem>>, vector<8x1xf32>
      tpu.vector_store %arg3[%c0_13, %c0_14], %18 {strides = array<i32>} : memref<8x1xf32, #tpu.memory_space<vmem>>, vector<8x1xf32>,
    } else {
    }
    return
  }
  func.func @transform_0(%arg0: i32, %arg1: i32) -> (i32, i32) {
    %c0_i32 = arith.constant 0 : i32
    return %arg0, %arg1 : i32, i32
  }
  func.func @transform_1(%arg0: i32, %arg1: i32) -> (i32, i32) {
    %c0_i32 = arith.constant 0 : i32
    %c0_i32_0 = arith.constant 0 : i32
    return %arg0, %c0_i32 : i32, i32
  }
}

</mosaic_0001>

<llo_original>
// kernel: tpu_custom_call.1
$region0: #{tpu_custom_call.1}
  #allocation0 [shape = 'u32[]', space=smem, size = 0x4, offset = 0x4, fixed_abs, tag = 'smem constant byte address 0x4 - core index']
  #allocation1 [shape = 'u32[144,128]{1,0:T(1,128)}', space=vmem, size = 0x12000, scoped, tag = 'internal scratch']
  #allocation2 [shape = 'f32[8,128]{1,0:T(8,128)}', space=vmem, size = 0x1000, scoped, tag = 'scratch operand']
  %s0 = inlined_call_operand.hbm [shape: f32[8,256], index: 0, kind: input, shape index: {}]
  %s1 = inlined_call_operand.vmem [shape: f32[8,1], index: 1, kind: output, shape index: {}]
  %s2 = sld [smem:[#allocation0]]
  $region26: #{tpu_custom_call.1} parent=0
    _
  %s4 = ssub.s32 1, %s2
  %s5 = scalar_select 0, %s4, %s2
  $region1: #{tpu_custom_call.1} parent=0
    #allocation3 [shape = 'u8[8192]{0}', space=vmem, size = 0x2000, scoped, tag = 'input window, operand 0, single buffered']
    #allocation4 [shape = 's32[1]{0}', space=sflag, size = 0x4, scoped, tag = 'scoped memory for tpu_custom_call.1']
    %6 = vsyncpa [#allocation4], 0
    // Predicated region
    $region2: #{tpu_custom_call.1} parent=1 // pred_check
      _
    $region3: #{tpu_custom_call.1} parent=1 // pred_check_branch
      %8 = sbr.rel (0) target = $region5
    $region4: #{tpu_custom_call.1} parent=1 // pred_region
      %s10 = ssub.s32 256, 256
      %11 = vsyncadd [#allocation4], %s10
      %s13 = sshll.u32 [#allocation3], 4
      %s14 = int_to_ptr.vmem [resolvable:$true] %s13
      %16 = dma.hbm_to_vmem [thread:$0]  %s0, 256, %s14, [#allocation4]
    $region5: #{tpu_custom_call.1} parent=1 // pred_fallthru
      _
    // Predicated region
    $region6: #{tpu_custom_call.1} parent=1 // pred_check
      _
    $region7: #{tpu_custom_call.1} parent=1 // pred_check_branch
      %18 = sbr.rel (0) target = $region9
    $region8: #{tpu_custom_call.1} parent=1 // pred_region
      %19 = dma.done [#allocation4], 256
    $region9: #{tpu_custom_call.1} parent=1 // pred_fallthru
      _
    %p20 = scmp.eq.s32.totalorder 0, 0
    // Predicated region
    $region10: #{tpu_custom_call.1} parent=1 // pred_check
      %p21 = pneg %p20
    $region11: #{tpu_custom_call.1} parent=1 // pred_check_branch
      %23 = sbr.rel (%p21) target = $region13
    $region12: #{tpu_custom_call.1} parent=1 // pred_region
      %24 = vst [vmem:[#allocation2] sm:$0xff] 0.0
    $region13: #{tpu_custom_call.1} parent=1 // pred_fallthru
      _
    %v25 = vld [vmem:[#allocation3] sm:$0xff]
    %v26 = vadd.f32 %v25, 0.0
    %v27 = vld [vmem:[#allocation3 + $0x8] sm:$0xff]
    %v28 = vadd.f32 %v26, %v27
    %v29 = vld [vmem:[#allocation2] sm:$0xff]
    %v30 = vadd.f32 %v29, %v28
    %31 = vst [vmem:[#allocation2] sm:$0xff] %v30
    // Predicated region
    $region14: #{tpu_custom_call.1} parent=1 // pred_check
      %p32 = pneg %p20
    $region15: #{tpu_custom_call.1} parent=1 // pred_check_branch
      %34 = sbr.rel (%p32) target = $region17
    $region16: #{tpu_custom_call.1} parent=1 // pred_region
      %v35 = vld [vmem:[#allocation2] sm:$0xff]
      %36 = vadd.xlane.f32.xlu0 %v35
      %v37 = vpop.xlane.xlu0 %36
      %v38 = vmul.f32 %v37, 0.00390625
      %vm39 = vcmask 7168
      %40 = vst.msk [vmem:[%s1] sm:$0xff] %vm39, %v38
    $region17: #{tpu_custom_call.1} parent=1 // pred_fallthru
      _
    // Predicated region
    $region18: #{tpu_custom_call.1} parent=1 // pred_check
      _
    $region19: #{tpu_custom_call.1} parent=1 // pred_check_branch
      %42 = sbr.rel (0) target = $region21
    $region20: #{tpu_custom_call.1} parent=1 // pred_region
      _
    $region21: #{tpu_custom_call.1} parent=1 // pred_fallthru
      _
    // Predicated region
    $region22: #{tpu_custom_call.1} parent=1 // pred_check
      _
    $region23: #{tpu_custom_call.1} parent=1 // pred_check_branch
      %44 = sbr.rel (0) target = $region25
    $region24: #{tpu_custom_call.1} parent=1 // pred_region
      _
    $region25: #{tpu_custom_call.1} parent=1 // pred_fallthru
      _
    %45 = vsyncpa [#allocation4], 1

</llo_original>
